<compile_context>
chip_gen: v6e
topology: v6e:2x2x1
jax: 0.10.0
libtpu: 0.0.40
codegen_flags: <defaults>
</compile_context>

<pallas_src>
import jax
import jax.numpy as jnp
from jax.experimental import pallas as pl
from jax.experimental.pallas import tpu as pltpu


def _erf_poly(z):
    """Abramowitz & Stegun 7.1.26 erf approximation, |error| <= 1.5e-7 (fp32)."""
    a1 = 0.254829592
    a2 = -0.284496736
    a3 = 1.421413741
    a4 = -1.453152027
    a5 = 1.061405429
    p = 0.3275911
    sign = jnp.where(z >= 0.0, 1.0, -1.0)
    az = jnp.abs(z)
    t = 1.0 / (1.0 + p * az)
    poly = ((((a5 * t + a4) * t + a3) * t + a2) * t + a1) * t
    y = 1.0 - poly * jnp.exp(-az * az)
    return sign * y


def _gelu_exact(x):
    """GELU with exact-erf semantics (torch.nn.GELU() default), fp32."""
    inv_sqrt2 = 0.7071067811865476
    return 0.5 * x * (1.0 + _erf_poly(x * inv_sqrt2))


def ffn_kernel(x_ref, w1_ref, b1_ref, w2_ref, b2_ref, o_ref):
    x = x_ref[...]                                            # (tm, D) fp32 tile

    # Linear1: bf16 MXU matmul, fp32 accumulate; weights already (D, H) bf16.
    u = jnp.dot(x.astype(jnp.bfloat16), w1_ref[...],
                preferred_element_type=jnp.float32)
    u = u + b1_ref[...]

    # Exact-erf GELU (fp32).  Dropout(p=0.0) is identity.
    u = _gelu_exact(u)

    # Linear2: bf16 MXU matmul, fp32 accumulate; weights already (H, D) bf16.
    o = jnp.dot(u.astype(jnp.bfloat16), w2_ref[...],
                preferred_element_type=jnp.float32)
    o_ref[...] = (o + b2_ref[...]).astype(o_ref.dtype)


def feed_forward(x, w1, b1, w2, b2, *, row_tile=128):
    """FeedForward forward pass.

    x : (..., D) float32
    w1: (H, D), b1: (H,)   -- nn.Linear(dim, hidden_dim) layout
    w2: (D, H), b2: (D,)   -- nn.Linear(hidden_dim, dim) layout
    """
    orig_shape = x.shape
    D = orig_shape[-1]
    H = w1.shape[0]
    rows = 1
    for s in orig_shape[:-1]:
        rows *= s
    xf = x.reshape(rows, D)

    # Row tile: multiple of 8, no larger than needed.
    tm = min(row_tile, max(8, rows))
    tm = max(8, (tm // 8) * 8)
    rows_p = pl.cdiv(rows, tm) * tm
    if rows_p != rows:
        xf = jnp.pad(xf, ((0, rows_p - rows), (0, 0)))

    # Pre-transpose + pre-cast weights once in the wrapper (no in-kernel .T).
    w1t = w1.T.astype(jnp.bfloat16)                 # (D, H)
    w2t = w2.T.astype(jnp.bfloat16)                 # (H, D)
    b1r = b1.reshape(1, H).astype(jnp.float32)
    b2r = b2.reshape(1, D).astype(jnp.float32)

    # VMEM budget: double-buffered blocks + hidden activation, with headroom,
    # clamped to a range safe on v5e / v6e / v7x.
    work_bytes = (
        2 * (2 * D * H * 2)        # W1^T, W2^T bf16, double-buffered
        + 2 * ((H + D) * 4)        # biases fp32, double-buffered
        + 2 * (tm * D * 4)         # x tile fp32, double-buffered
        + 2 * (tm * D * 4)         # out tile fp32, double-buffered
        + 2 * (tm * H * 4)         # hidden activation + temps
    )
    vmem_limit = int(1.5 * work_bytes) + (2 << 20)
    vmem_limit = max(8 << 20, min(vmem_limit, 64 << 20))

    out = pl.pallas_call(
        ffn_kernel,
        out_shape=jax.ShapeDtypeStruct((rows_p, D), x.dtype),
        grid=(rows_p // tm,),
        in_specs=[
            pl.BlockSpec((tm, D), lambda i: (i, 0)),     # x row tile
            pl.BlockSpec((D, H), lambda i: (0, 0)),      # W1^T (constant block)
            pl.BlockSpec((1, H), lambda i: (0, 0)),      # b1
            pl.BlockSpec((H, D), lambda i: (0, 0)),      # W2^T (constant block)
            pl.BlockSpec((1, D), lambda i: (0, 0)),      # b2
        ],
        out_specs=pl.BlockSpec((tm, D), lambda i: (i, 0)),
        compiler_params=pltpu.CompilerParams(
            dimension_semantics=("parallel",),
            vmem_limit_bytes=vmem_limit,
        ),
    )(xf, w1t, b1r, w2t, b2r)

    if rows_p != rows:
        out = out[:rows]
    return out.reshape(orig_shape)


def reference_ffn(x, w1, b1, w2, b2):
    """Pure-JAX fp32 reference mirroring the PyTorch forward semantics."""
    u = jax.nn.gelu(x @ w1.T + b1, approximate=False)
    return u @ w2.T + b2


if __name__ == "__main__":
    # Small but lane-dense shapes: B=2, N=8 tokens, dim=128, hidden_dim=256.
    B, N, DIM, HIDDEN = 2, 8, 128, 256

    key = jax.random.PRNGKey(0)
    kx, k1, k2, k3, k4 = jax.random.split(key, 5)
    x = jax.random.normal(kx, (B, N, DIM), jnp.float32)
    w1 = 0.05 * jax.random.normal(k1, (HIDDEN, DIM), jnp.float32)
    b1 = 0.01 * jax.random.normal(k2, (HIDDEN,), jnp.float32)
    w2 = 0.05 * jax.random.normal(k3, (DIM, HIDDEN), jnp.float32)
    b2 = 0.01 * jax.random.normal(k4, (DIM,), jnp.float32)

    out = feed_forward(x, w1, b1, w2, b2)
    out = jax.block_until_ready(out)

    ref = reference_ffn(x, w1, b1, w2, b2)
    assert out.shape == (B, N, DIM)
    # bf16 MXU operands with fp32 accumulation -> small numeric delta vs fp32 ref.
    assert jnp.allclose(out, ref, atol=2e-2, rtol=2e-2), "mismatch vs JAX reference"

    print("KERNEL_OK")
</pallas_src>

<mosaic_0001>
module attributes {stable_mosaic.version = 11 : i64} {
  func.func @ffn_kernel(%arg0: i32, %arg1: memref<16x128xf32, #tpu.memory_space<vmem>>, %arg2: memref<128x256xbf16, #tpu.memory_space<vmem>>, %arg3: memref<1x256xf32, #tpu.memory_space<vmem>>, %arg4: memref<256x128xbf16, #tpu.memory_space<vmem>>, %arg5: memref<1x128xf32, #tpu.memory_space<vmem>>, %arg6: memref<16x128xf32, #tpu.memory_space<vmem>>) attributes {dimension_semantics = [#tpu.dimension_semantics<parallel>], iteration_bounds = array<i64: 1>, scalar_prefetch = 0 : i64, scratch_operands = 0 : i64, tpu.core_type = #tpu.core_type<tc>, window_params = [{transform_indices = @transform_0, window_bounds = array<i64: 16, 128>}, {pipeline_mode = #tpu.pipeline_mode<synchronous>, transform_indices = @transform_1, window_bounds = array<i64: 128, 256>}, {pipeline_mode = #tpu.pipeline_mode<synchronous>, transform_indices = @transform_2, window_bounds = array<i64: 1, 256>}, {pipeline_mode = #tpu.pipeline_mode<synchronous>, transform_indices = @transform_3, window_bounds = array<i64: 256, 128>}, {pipeline_mode = #tpu.pipeline_mode<synchronous>, transform_indices = @transform_4, window_bounds = array<i64: 1, 128>}, {transform_indices = @transform_5, window_bounds = array<i64: 16, 128>}]} {
    %c0 = arith.constant 0 : index
    %c0_0 = arith.constant 0 : index
    %0 = vector.load %arg1[%c0, %c0_0] : memref<16x128xf32, #tpu.memory_space<vmem>>, vector<16x128xf32>
    %1 = arith.truncf %0 : vector<16x128xf32> to vector<16x128xbf16>
    %c0_1 = arith.constant 0 : index
    %c0_2 = arith.constant 0 : index
    %2 = vector.load %arg2[%c0_1, %c0_2] : memref<128x256xbf16, #tpu.memory_space<vmem>>, vector<128x256xbf16>
    %cst = arith.constant dense<0.000000e+00> : vector<16x256xf32>
    %3 = tpu.matmul %1, %2, %cst {dimension_numbers = #tpu.dot_dimension_numbers<[1], [0], [0], [1], [0, 0, 1, 1], [], []>} : vector<16x128xbf16>, vector<128x256xbf16>, vector<16x256xf32> -> vector<16x256xf32>
    %c0_3 = arith.constant 0 : index
    %c0_4 = arith.constant 0 : index
    %4 = vector.load %arg3[%c0_3, %c0_4] : memref<1x256xf32, #tpu.memory_space<vmem>>, vector<1x256xf32>
    %5 = vector.broadcast %4 : vector<1x256xf32> to vector<16x256xf32>
    %6 = arith.addf %3, %5 : vector<16x256xf32>
    %cst_5 = arith.constant 5.000000e-01 : f32
    %7 = vector.broadcast %cst_5 : f32 to vector<16x256xf32>
    %8 = arith.mulf %7, %6 : vector<16x256xf32>
    %cst_6 = arith.constant 0.707106769 : f32
    %9 = vector.broadcast %cst_6 : f32 to vector<16x256xf32>
    %10 = arith.mulf %6, %9 : vector<16x256xf32>
    %cst_7 = arith.constant 0.000000e+00 : f32
    %11 = vector.broadcast %cst_7 : f32 to vector<16x256xf32>
    %12 = arith.cmpf oge, %10, %11 : vector<16x256xf32>
    %cst_8 = arith.constant 1.000000e+00 : f32
    %cst_9 = arith.constant -1.000000e+00 : f32
    %13 = vector.broadcast %cst_8 : f32 to vector<16x256xf32>
    %14 = vector.broadcast %cst_9 : f32 to vector<16x256xf32>
    %15 = arith.select %12, %13, %14 : vector<16x256xi1>, vector<16x256xf32>
    %16 = math.absf %10 : vector<16x256xf32>
    %cst_10 = arith.constant 0.327591091 : f32
    %17 = vector.broadcast %cst_10 : f32 to vector<16x256xf32>
    %18 = arith.mulf %17, %16 : vector<16x256xf32>
    %cst_11 = arith.constant 1.000000e+00 : f32
    %19 = vector.broadcast %cst_11 : f32 to vector<16x256xf32>
    %20 = arith.addf %19, %18 : vector<16x256xf32>
    %cst_12 = arith.constant 1.000000e+00 : f32
    %21 = vector.broadcast %cst_12 : f32 to vector<16x256xf32>
    %22 = arith.divf %21, %20 : vector<16x256xf32>
    %cst_13 = arith.constant 1.06140542 : f32
    %23 = vector.broadcast %cst_13 : f32 to vector<16x256xf32>
    %24 = arith.mulf %23, %22 : vector<16x256xf32>
    %cst_14 = arith.constant -1.45315206 : f32
    %25 = vector.broadcast %cst_14 : f32 to vector<16x256xf32>
    %26 = arith.addf %24, %25 : vector<16x256xf32>
    %27 = arith.mulf %26, %22 : vector<16x256xf32>
    %cst_15 = arith.constant 1.42141378 : f32
    %28 = vector.broadcast %cst_15 : f32 to vector<16x256xf32>
    %29 = arith.addf %27, %28 : vector<16x256xf32>
    %30 = arith.mulf %29, %22 : vector<16x256xf32>
    %cst_16 = arith.constant -0.284496725 : f32
    %31 = vector.broadcast %cst_16 : f32 to vector<16x256xf32>
    %32 = arith.addf %30, %31 : vector<16x256xf32>
    %33 = arith.mulf %32, %22 : vector<16x256xf32>
    %cst_17 = arith.constant 0.254829586 : f32
    %34 = vector.broadcast %cst_17 : f32 to vector<16x256xf32>
    %35 = arith.addf %33, %34 : vector<16x256xf32>
    %36 = arith.mulf %35, %22 : vector<16x256xf32>
    %cst_18 = arith.constant 0.000000e+00 : f32
    %37 = vector.broadcast %cst_18 : f32 to vector<16x256xf32>
    %38 = arith.subf %37, %16 : vector<16x256xf32>
    %39 = arith.mulf %38, %16 : vector<16x256xf32>
    %40 = math.exp %39 : vector<16x256xf32>
    %41 = arith.mulf %36, %40 : vector<16x256xf32>
    %cst_19 = arith.constant 1.000000e+00 : f32
    %42 = vector.broadcast %cst_19 : f32 to vector<16x256xf32>
    %43 = arith.subf %42, %41 : vector<16x256xf32>
    %44 = arith.mulf %15, %43 : vector<16x256xf32>
    %cst_20 = arith.constant 1.000000e+00 : f32
    %45 = vector.broadcast %cst_20 : f32 to vector<16x256xf32>
    %46 = arith.addf %45, %44 : vector<16x256xf32>
    %47 = arith.mulf %8, %46 : vector<16x256xf32>
    %48 = arith.truncf %47 : vector<16x256xf32> to vector<16x256xbf16>
    %c0_21 = arith.constant 0 : index
    %c0_22 = arith.constant 0 : index
    %49 = vector.load %arg4[%c0_21, %c0_22] : memref<256x128xbf16, #tpu.memory_space<vmem>>, vector<256x128xbf16>
    %cst_23 = arith.constant dense<0.000000e+00> : vector<16x128xf32>
    %50 = tpu.matmul %48, %49, %cst_23 {dimension_numbers = #tpu.dot_dimension_numbers<[1], [0], [0], [1], [0, 0, 1, 1], [], []>} : vector<16x256xbf16>, vector<256x128xbf16>, vector<16x128xf32> -> vector<16x128xf32>
    %c0_24 = arith.constant 0 : index
    %c0_25 = arith.constant 0 : index
    %51 = vector.load %arg5[%c0_24, %c0_25] : memref<1x128xf32, #tpu.memory_space<vmem>>, vector<1x128xf32>
    %52 = vector.broadcast %51 : vector<1x128xf32> to vector<16x128xf32>
    %53 = arith.addf %50, %52 : vector<16x128xf32>
    %c0_26 = arith.constant 0 : index
    %c0_27 = arith.constant 0 : index
    %54 = vector.load %arg6[%c0_26, %c0_27] : memref<16x128xf32, #tpu.memory_space<vmem>>, vector<16x128xf32>
    tpu.vector_store %arg6[%c0_26, %c0_27], %53 {strides = array<i32>} : memref<16x128xf32, #tpu.memory_space<vmem>>, vector<16x128xf32>,
    return
  }
  func.func @transform_0(%arg0: i32) -> (i32, i32) {
    %c0_i32 = arith.constant 0 : i32
    %c0_i32_0 = arith.constant 0 : i32
    return %arg0, %c0_i32 : i32, i32
  }
  func.func @transform_1(%arg0: i32) -> (i32, i32) {
    %c0_i32 = arith.constant 0 : i32
    %c0_i32_0 = arith.constant 0 : i32
    %c0_i32_1 = arith.constant 0 : i32
    return %c0_i32, %c0_i32_0 : i32, i32
  }
  func.func @transform_2(%arg0: i32) -> (i32, i32) {
    %c0_i32 = arith.constant 0 : i32
    %c0_i32_0 = arith.constant 0 : i32
    %c0_i32_1 = arith.constant 0 : i32
    return %c0_i32, %c0_i32_0 : i32, i32
  }
  func.func @transform_3(%arg0: i32) -> (i32, i32) {
    %c0_i32 = arith.constant 0 : i32
    %c0_i32_0 = arith.constant 0 : i32
    %c0_i32_1 = arith.constant 0 : i32
    return %c0_i32, %c0_i32_0 : i32, i32
  }
  func.func @transform_4(%arg0: i32) -> (i32, i32) {
    %c0_i32 = arith.constant 0 : i32
    %c0_i32_0 = arith.constant 0 : i32
    %c0_i32_1 = arith.constant 0 : i32
    return %c0_i32, %c0_i32_0 : i32, i32
  }
  func.func @transform_5(%arg0: i32) -> (i32, i32) {
    %c0_i32 = arith.constant 0 : i32
    %c0_i32_0 = arith.constant 0 : i32
    return %arg0, %c0_i32 : i32, i32
  }
}

</mosaic_0001>

<llo_original>
// kernel: tpu_custom_call.1
$region0: #{tpu_custom_call.1}
  #allocation0 [shape = 'u32[]', space=smem, size = 0x4, offset = 0x4, fixed_abs, tag = 'smem constant byte address 0x4 - core index']
  #allocation1 [shape = 'u32[144,128]{1,0:T(1,128)}', space=vmem, size = 0x12000, scoped, tag = 'internal scratch']
  %s0 = inlined_call_operand.hbm [shape: f32[16,128], index: 0, kind: input, shape index: {}]
  %s1 = inlined_call_operand.hbm [shape: bf16[128,256], index: 1, kind: input, shape index: {}]
  %s2 = inlined_call_operand.vmem [shape: f32[1,256], index: 2, kind: input, shape index: {}]
  %s3 = inlined_call_operand.hbm [shape: bf16[256,128], index: 3, kind: input, shape index: {}]
  %s4 = inlined_call_operand.vmem [shape: f32[1,128], index: 4, kind: input, shape index: {}]
  %s5 = inlined_call_operand.hbm [shape: f32[16,128], index: 5, kind: output, shape index: {}]
  %s6 = sld [smem:[#allocation0]]
  $region42: #{tpu_custom_call.1} parent=0
    _
  %s8 = ssub.s32 1, %s6
  %s9 = scalar_select 0, %s8, %s6
  $region1: #{tpu_custom_call.1} parent=0
    #allocation2 [shape = 'u8[8192]{0}', space=vmem, size = 0x2000, scoped, tag = 'input window, operand 0, single buffered']
    #allocation3 [shape = 's32[1]{0}', space=sflag, size = 0x4, scoped, tag = 'scoped memory for tpu_custom_call.1']
    #allocation4 [shape = 's32[1]{0}', space=sflag, size = 0x4, scoped, tag = 'scoped memory for tpu_custom_call.1']
    #allocation5 [shape = 'u8[65536]{0}', space=vmem, size = 0x10000, scoped, tag = 'input window, operand 1, single buffered']
    #allocation6 [shape = 's32[1]{0}', space=sflag, size = 0x4, scoped, tag = 'scoped memory for tpu_custom_call.1']
    #allocation7 [shape = 'u8[65536]{0}', space=vmem, size = 0x10000, scoped, tag = 'input window, operand 3, single buffered']
    #allocation8 [shape = 'u8[8192]{0}', space=vmem, size = 0x2000, scoped, tag = 'output window, operand 0, single buffered']
    %10 = vsyncpa [#allocation3], 0
    %11 = vsyncpa [#allocation6], 0
    %12 = vsyncpa [#allocation4], 0
    // Predicated region
    $region2: #{tpu_custom_call.1} parent=1 // pred_check
      _
    $region3: #{tpu_custom_call.1} parent=1 // pred_check_branch
      %14 = sbr.rel (0) target = $region5
    $region4: #{tpu_custom_call.1} parent=1 // pred_region
      %s16 = ssub.s32 256, 256
      %17 = vsyncadd [#allocation3], %s16
      %s18 = sshll.u32 [#allocation2], 4
      %s19 = int_to_ptr.vmem [resolvable:$true] %s18
      %24 = dma.hbm_to_vmem [thread:$0]  %s0, 256, %s19, [#allocation3], 128, 128, 8
    $region5: #{tpu_custom_call.1} parent=1 // pred_fallthru
      _
    // Predicated region
    $region6: #{tpu_custom_call.1} parent=1 // pred_check
      _
    $region7: #{tpu_custom_call.1} parent=1 // pred_check_branch
      %26 = sbr.rel (0) target = $region9
    $region8: #{tpu_custom_call.1} parent=1 // pred_region
      %s28 = ssub.s32 2048, 2048
      %29 = vsyncadd [#allocation6], %s28
      %s30 = sshll.u32 [#allocation5], 4
      %s31 = int_to_ptr.vmem [resolvable:$true] %s30
      %36 = dma.hbm_to_vmem [thread:$0]  %s1, 2048, %s31, [#allocation6], 128, 128, 8
    $region9: #{tpu_custom_call.1} parent=1 // pred_fallthru
      _
    // Predicated region
    $region10: #{tpu_custom_call.1} parent=1 // pred_check
      _
    $region11: #{tpu_custom_call.1} parent=1 // pred_check_branch
      %38 = sbr.rel (0) target = $region13
    $region12: #{tpu_custom_call.1} parent=1 // pred_region
      _
    $region13: #{tpu_custom_call.1} parent=1 // pred_fallthru
      _
    // Predicated region
    $region14: #{tpu_custom_call.1} parent=1 // pred_check
      _
    $region15: #{tpu_custom_call.1} parent=1 // pred_check_branch
      %40 = sbr.rel (0) target = $region17
    $region16: #{tpu_custom_call.1} parent=1 // pred_region
      %s42 = ssub.s32 2048, 2048
      %43 = vsyncadd [#allocation6], %s42
      %s44 = sshll.u32 [#allocation7], 4
      %s45 = int_to_ptr.vmem [resolvable:$true] %s44
      %50 = dma.hbm_to_vmem [thread:$0]  %s3, 2048, %s45, [#allocation6], 64, 64, 4
    $region17: #{tpu_custom_call.1} parent=1 // pred_fallthru
      _
    // Predicated region
    $region18: #{tpu_custom_call.1} parent=1 // pred_check
      _
    $region19: #{tpu_custom_call.1} parent=1 // pred_check_branch
      %52 = sbr.rel (0) target = $region21
    $region20: #{tpu_custom_call.1} parent=1 // pred_region
      _
    $region21: #{tpu_custom_call.1} parent=1 // pred_fallthru
      _
    // Predicated region
    $region22: #{tpu_custom_call.1} parent=1 // pred_check
      _
    $region23: #{tpu_custom_call.1} parent=1 // pred_check_branch
      %54 = sbr.rel (0) target = $region25
    $region24: #{tpu_custom_call.1} parent=1 // pred_region
      %55 = dma.done [#allocation3], 256
    $region25: #{tpu_custom_call.1} parent=1 // pred_fallthru
      _
    // Predicated region
    $region26: #{tpu_custom_call.1} parent=1 // pred_check
      _
    $region27: #{tpu_custom_call.1} parent=1 // pred_check_branch
      %57 = sbr.rel (0) target = $region29
    $region28: #{tpu_custom_call.1} parent=1 // pred_region
      %58 = dma.done [#allocation6], 2048
    $region29: #{tpu_custom_call.1} parent=1 // pred_fallthru
      _
    // Predicated region
    $region30: #{tpu_custom_call.1} parent=1 // pred_check
      _
    $region31: #{tpu_custom_call.1} parent=1 // pred_check_branch
      %60 = sbr.rel (0) target = $region33
    $region32: #{tpu_custom_call.1} parent=1 // pred_region
      %61 = dma.done [#allocation6], 2048
    $region33: #{tpu_custom_call.1} parent=1 // pred_fallthru
      _
    %v63 = vld [vmem:[#allocation2] sm:$0xff]
    %v64 = vld [vmem:[#allocation2 + $0x8] sm:$0xff]
    %v65 = vpack.c.bf16 %v64, %v63
    %v66 = vld [vmem:[#allocation5] sm:$0xff]
    %v67 = vld [vmem:[#allocation5 + $0x8] sm:$0xff]
    %v68 = vld [vmem:[#allocation5 + $0x10] sm:$0xff]
    %v69 = vld [vmem:[#allocation5 + $0x18] sm:$0xff]
    %v70 = vld [vmem:[#allocation5 + $0x20] sm:$0xff]
    %v71 = vld [vmem:[#allocation5 + $0x28] sm:$0xff]
    %v72 = vld [vmem:[#allocation5 + $0x30] sm:$0xff]
    %v73 = vld [vmem:[#allocation5 + $0x38] sm:$0xff]
    %v74 = vld [vmem:[#allocation5 + $0x40] sm:$0xff]
    %v75 = vld [vmem:[#allocation5 + $0x48] sm:$0xff]
    %v76 = vld [vmem:[#allocation5 + $0x50] sm:$0xff]
    %v77 = vld [vmem:[#allocation5 + $0x58] sm:$0xff]
    %v78 = vld [vmem:[#allocation5 + $0x60] sm:$0xff]
    %v79 = vld [vmem:[#allocation5 + $0x68] sm:$0xff]
    %v80 = vld [vmem:[#allocation5 + $0x70] sm:$0xff]
    %v81 = vld [vmem:[#allocation5 + $0x78] sm:$0xff]
    %v82 = vld [vmem:[%s2] sm:$0x3]
    %v84 = vlaneseq
    %v85 = vshrl.u32 %v84, 7
    %v86 = vsub.s32 0, %v85
    %v87 = vrot.slane %v82, %v86
    %v88 = vlaneseq
    %v89 = vshrl.u32 %v88, 7
    %v90 = vsub.s32 1, %v89
    %v91 = vrot.slane %v82, %v90
    %v110 = vunpack.c.l.b16 %v66
    %v111 = vunpack.c.h.b16 %v66
    %v112 = vunpack.c.l.b16 %v67
    %v113 = vunpack.c.h.b16 %v67
    %v114 = vunpack.c.l.b16 %v68
    %v115 = vunpack.c.h.b16 %v68
    %v116 = vunpack.c.l.b16 %v69
    %v117 = vunpack.c.h.b16 %v69
    %v118 = vunpack.c.l.b16 %v70
    %v119 = vunpack.c.h.b16 %v70
    %v120 = vunpack.c.l.b16 %v71
    %v121 = vunpack.c.h.b16 %v71
    %v122 = vunpack.c.l.b16 %v72
    %v123 = vunpack.c.h.b16 %v72
    %v124 = vunpack.c.l.b16 %v73
    %v125 = vunpack.c.h.b16 %v73
    %v126 = vunpack.c.l.b16 %v74
    %v127 = vunpack.c.h.b16 %v74
    %v128 = vunpack.c.l.b16 %v75
    %v129 = vunpack.c.h.b16 %v75
    %v130 = vunpack.c.l.b16 %v76
    %v131 = vunpack.c.h.b16 %v76
    %v132 = vunpack.c.l.b16 %v77
    %v133 = vunpack.c.h.b16 %v77
    %v134 = vunpack.c.l.b16 %v78
    %v135 = vunpack.c.h.b16 %v78
    %v136 = vunpack.c.l.b16 %v79
    %v137 = vunpack.c.h.b16 %v79
    %v138 = vunpack.c.l.b16 %v80
    %v139 = vunpack.c.h.b16 %v80
    %v140 = vunpack.c.l.b16 %v81
    %v141 = vunpack.c.h.b16 %v81
    %v142 = vpack.c.b16 %v112, %v110
    %v143 = vpack.c.b16 %v113, %v111
    %v144 = vpack.c.b16 %v116, %v114
    %v145 = vpack.c.b16 %v117, %v115
    %v146 = vpack.c.b16 %v120, %v118
    %v147 = vpack.c.b16 %v121, %v119
    %v148 = vpack.c.b16 %v124, %v122
    %v149 = vpack.c.b16 %v125, %v123
    %v150 = vpack.c.b16 %v128, %v126
    %v151 = vpack.c.b16 %v129, %v127
    %v152 = vpack.c.b16 %v132, %v130
    %v153 = vpack.c.b16 %v133, %v131
    %v154 = vpack.c.b16 %v136, %v134
    %v155 = vpack.c.b16 %v137, %v135
    %v156 = vpack.c.b16 %v140, %v138
    %v157 = vpack.c.b16 %v141, %v139
    %174 = vmatprep.subr.bf16.mxu0 %v157
    %175 = vmatpush1.bf16.msra.mxu0 %v156
    %176 = vmatprep.subr.bf16.mxu0 %v155
    %177 = vmatpush1.bf16.msra.mxu0 %v154
    %178 = vmatprep.subr.bf16.mxu0 %v153
    %179 = vmatpush1.bf16.msra.mxu0 %v152
    %180 = vmatprep.subr.bf16.mxu0 %v151
    %181 = vmatpush1.bf16.msra.mxu0 %v150
    %182 = vmatprep.subr.bf16.mxu0 %v149
    %183 = vmatpush1.bf16.msra.mxu0 %v148
    %184 = vmatprep.subr.bf16.mxu0 %v147
    %185 = vmatpush1.bf16.msra.mxu0 %v146
    %186 = vmatprep.subr.bf16.mxu0 %v145
    %187 = vmatpush1.bf16.msra.mxu0 %v144
    %188 = vmatprep.subr.bf16.mxu0 %v143
    %189 = vmatpush1.bf16.msra.mxu0 %v142
    %190 = vmatprep.subr.bf16.mxu0 0
    %191 = vmatpush2.bf16.msra.mxu0 0
    %192 = vmatprep.subr.bf16.mxu0 0
    %193 = vmatpush2.bf16.msra.mxu0 0
    %194 = vmatprep.subr.bf16.mxu0 0
    %195 = vmatpush2.bf16.msra.mxu0 0
    %196 = vmatprep.subr.bf16.mxu0 0
    %197 = vmatpush2.bf16.msra.mxu0 0
    %198 = vmatprep.subr.bf16.mxu0 0
    %199 = vmatpush2.bf16.msra.mxu0 0
    %200 = vmatprep.subr.bf16.mxu0 0
    %201 = vmatpush2.bf16.msra.mxu0 0
    %202 = vmatprep.subr.bf16.mxu0 0
    %203 = vmatpush2.bf16.msra.mxu0 0
    %204 = vmatprep.subr.bf16.mxu0 0
    %205 = vmatpush2.bf16.msra.mxu0 0
    %206 = vmatprep.mubr.bf16.mxu0 0
    %207 = vmatmul.mubr.bf16.gmra.mxu0 %v65
    %v208 = vpop.f32.mrf.mxu0
    %v209 = vadd.f32 %v87, %v208
    %v210 = vpop.f32.mrf.mxu0
    %v211 = vadd.f32 %v91, %v210
    %v212 = vpop.f32.mrf.mxu0
    %v213 = vadd.f32 %v87, %v212
    %v214 = vpop.f32.mrf.mxu0
    %v215 = vadd.f32 %v91, %v214
    %216 = vdwg.mxu0
    %v217 = vmul.f32 %v209, 0.5
    %v218 = vmul.f32 %v211, 0.5
    %v219 = vmul.f32 %v213, 0.5
    %v220 = vmul.f32 %v215, 0.5
    %v221 = vmul.f32 %v209, 0.70710677
    %v222 = vmul.f32 %v211, 0.70710677
    %v223 = vmul.f32 %v213, 0.70710677
    %v224 = vmul.f32 %v215, 0.70710677
    %vm225 = vcmp.ge.f32.partialorder %v221, 0.0
    %vm226 = vcmp.ge.f32.partialorder %v222, 0.0
    %vm227 = vcmp.ge.f32.partialorder %v223, 0.0
    %vm228 = vcmp.ge.f32.partialorder %v224, 0.0
    %v229 = vsel %vm225, 1.0, -1.0
    %v230 = vsel %vm226, 1.0, -1.0
    %v231 = vsel %vm227, 1.0, -1.0
    %v232 = vsel %vm228, 1.0, -1.0
    %v233 = vand.u32 2147483647, %v221
    %v234 = vand.u32 2147483647, %v222
    %v235 = vand.u32 2147483647, %v223
    %v236 = vand.u32 2147483647, %v224
    %v237 = vmul.f32 %v233, 0.3275911
    %v238 = vmul.f32 %v234, 0.3275911
    %v239 = vmul.f32 %v235, 0.3275911
    %v240 = vmul.f32 %v236, 0.3275911
    %v241 = vadd.f32 %v237, 1.0
    %v242 = vadd.f32 %v238, 1.0
    %v243 = vadd.f32 %v239, 1.0
    %v244 = vadd.f32 %v240, 1.0
    %v245 = vrcp.pop %v241
    %v246 = vmul.f32 1.0, %v245
    %v247 = vrcp.pop %v242
    %v248 = vmul.f32 1.0, %v247
    %v249 = vrcp.pop %v243
    %v250 = vmul.f32 1.0, %v249
    %v251 = vrcp.pop %v244
    %v252 = vmul.f32 1.0, %v251
    %v253 = vmul.f32 %v246, 1.0614054
    %v254 = vmul.f32 %v248, 1.0614054
    %v255 = vmul.f32 %v250, 1.0614054
    %v256 = vmul.f32 %v252, 1.0614054
    %v257 = vadd.f32 %v253, -1.4531521
    %v258 = vadd.f32 %v254, -1.4531521
    %v259 = vadd.f32 %v255, -1.4531521
    %v260 = vadd.f32 %v256, -1.4531521
    %v261 = vmul.f32 %v257, %v246
    %v262 = vmul.f32 %v258, %v248
    %v263 = vmul.f32 %v259, %v250
    %v264 = vmul.f32 %v260, %v252
    %v265 = vadd.f32 %v261, 1.4214138
    %v266 = vadd.f32 %v262, 1.4214138
    %v267 = vadd.f32 %v263, 1.4214138
    %v268 = vadd.f32 %v264, 1.4214138
    %v269 = vmul.f32 %v265, %v246
    %v270 = vmul.f32 %v266, %v248
    %v271 = vmul.f32 %v267, %v250
    %v272 = vmul.f32 %v268, %v252
    %v273 = vadd.f32 %v269, -0.28449672
    %v274 = vadd.f32 %v270, -0.28449672
    %v275 = vadd.f32 %v271, -0.28449672
    %v276 = vadd.f32 %v272, -0.28449672
    %v277 = vmul.f32 %v273, %v246
    %v278 = vmul.f32 %v274, %v248
    %v279 = vmul.f32 %v275, %v250
    %v280 = vmul.f32 %v276, %v252
    %v281 = vadd.f32 %v277, 0.2548296
    %v282 = vadd.f32 %v278, 0.2548296
    %v283 = vadd.f32 %v279, 0.2548296
    %v284 = vadd.f32 %v280, 0.2548296
    %v285 = vmul.f32 %v281, %v246
    %v286 = vmul.f32 %v282, %v248
    %v287 = vmul.f32 %v283, %v250
    %v288 = vmul.f32 %v284, %v252
    %v289 = vsub.f32 0.0, %v233
    %v290 = vsub.f32 0.0, %v234
    %v291 = vsub.f32 0.0, %v235
    %v292 = vsub.f32 0.0, %v236
    %v293 = vmul.f32 %v289, %v233
    %v294 = vmul.f32 %v290, %v234
    %v295 = vmul.f32 %v291, %v235
    %v296 = vmul.f32 %v292, %v236
    %v297 = vmul.f32 %v293, 1.442695
    %v298 = vpow.pop %v297
    %v299 = vmul.f32 %v294, 1.442695
    %v300 = vpow.pop %v299
    %v301 = vmul.f32 %v295, 1.442695
    %v302 = vpow.pop %v301
    %v303 = vmul.f32 %v296, 1.442695
    %v304 = vpow.pop %v303
    %v305 = vmul.f32 %v285, %v298
    %v306 = vmul.f32 %v286, %v300
    %v307 = vmul.f32 %v287, %v302
    %v308 = vmul.f32 %v288, %v304
    %v309 = vsub.f32 1.0, %v305
    %v310 = vsub.f32 1.0, %v306
    %v311 = vsub.f32 1.0, %v307
    %v312 = vsub.f32 1.0, %v308
    %v313 = vmul.f32 %v229, %v309
    %v314 = vmul.f32 %v230, %v310
    %v315 = vmul.f32 %v231, %v311
    %v316 = vmul.f32 %v232, %v312
    %v317 = vadd.f32 %v313, 1.0
    %v318 = vadd.f32 %v314, 1.0
    %v319 = vadd.f32 %v315, 1.0
    %v320 = vadd.f32 %v316, 1.0
    %v321 = vmul.f32 %v217, %v317
    %v322 = vmul.f32 %v218, %v318
    %v323 = vmul.f32 %v219, %v319
    %v324 = vmul.f32 %v220, %v320
    %v325 = vpack.c.bf16 %v323, %v321
    %v326 = vpack.c.bf16 %v324, %v322
    %v327 = vld [vmem:[#allocation7] sm:$0xf]
    %v328 = vld [vmem:[#allocation7 + $0x4] sm:$0xf]
    %v329 = vld [vmem:[#allocation7 + $0x8] sm:$0xf]
    %v330 = vld [vmem:[#allocation7 + $0xc] sm:$0xf]
    %v331 = vld [vmem:[#allocation7 + $0x10] sm:$0xf]
    %v332 = vld [vmem:[#allocation7 + $0x14] sm:$0xf]
    %v333 = vld [vmem:[#allocation7 + $0x18] sm:$0xf]
    %v334 = vld [vmem:[#allocation7 + $0x1c] sm:$0xf]
    %v335 = vld [vmem:[#allocation7 + $0x20] sm:$0xf]
    %v336 = vld [vmem:[#allocation7 + $0x24] sm:$0xf]
    %v337 = vld [vmem:[#allocation7 + $0x28] sm:$0xf]
    %v338 = vld [vmem:[#allocation7 + $0x2c] sm:$0xf]
    %v339 = vld [vmem:[#allocation7 + $0x30] sm:$0xf]
    %v340 = vld [vmem:[#allocation7 + $0x34] sm:$0xf]
    %v341 = vld [vmem:[#allocation7 + $0x38] sm:$0xf]
    %v342 = vld [vmem:[#allocation7 + $0x3c] sm:$0xf]
    %v343 = vld [vmem:[#allocation7 + $0x40] sm:$0xf]
    %v344 = vld [vmem:[#allocation7 + $0x44] sm:$0xf]
    %v345 = vld [vmem:[#allocation7 + $0x48] sm:$0xf]
    %v346 = vld [vmem:[#allocation7 + $0x4c] sm:$0xf]
    %v347 = vld [vmem:[#allocation7 + $0x50] sm:$0xf]
    %v348 = vld [vmem:[#allocation7 + $0x54] sm:$0xf]
    %v349 = vld [vmem:[#allocation7 + $0x58] sm:$0xf]
    %v350 = vld [vmem:[#allocation7 + $0x5c] sm:$0xf]
    %v351 = vld [vmem:[#allocation7 + $0x60] sm:$0xf]
    %v352 = vld [vmem:[#allocation7 + $0x64] sm:$0xf]
    %v353 = vld [vmem:[#allocation7 + $0x68] sm:$0xf]
    %v354 = vld [vmem:[#allocation7 + $0x6c] sm:$0xf]
    %v355 = vld [vmem:[#allocation7 + $0x70] sm:$0xf]
    %v356 = vld [vmem:[#allocation7 + $0x74] sm:$0xf]
    %v357 = vld [vmem:[#allocation7 + $0x78] sm:$0xf]
    %v358 = vld [vmem:[#allocation7 + $0x7c] sm:$0xf]
    %v359 = vld [vmem:[%s4] sm:$0x1]
    %v361 = vlaneseq
    %v362 = vshrl.u32 %v361, 7
    %v363 = vsub.s32 0, %v362
    %v364 = vrot.slane %v359, %v363
    %v398 = vunpack.c.l.b16 %v327
    %v399 = vunpack.c.l.b16 %v328
    %v400 = vunpack.c.l.b16 %v329
    %v401 = vunpack.c.l.b16 %v330
    %v402 = vunpack.c.l.b16 %v331
    %v403 = vunpack.c.l.b16 %v332
    %v404 = vunpack.c.l.b16 %v333
    %v405 = vunpack.c.l.b16 %v334
    %v406 = vunpack.c.l.b16 %v335
    %v407 = vunpack.c.l.b16 %v336
    %v408 = vunpack.c.l.b16 %v337
    %v409 = vunpack.c.l.b16 %v338
    %v410 = vunpack.c.l.b16 %v339
    %v411 = vunpack.c.l.b16 %v340
    %v412 = vunpack.c.l.b16 %v341
    %v413 = vunpack.c.l.b16 %v342
    %v414 = vunpack.c.l.b16 %v343
    %v415 = vunpack.c.l.b16 %v344
    %v416 = vunpack.c.l.b16 %v345
    %v417 = vunpack.c.l.b16 %v346
    %v418 = vunpack.c.l.b16 %v347
    %v419 = vunpack.c.l.b16 %v348
    %v420 = vunpack.c.l.b16 %v349
    %v421 = vunpack.c.l.b16 %v350
    %v422 = vunpack.c.l.b16 %v351
    %v423 = vunpack.c.l.b16 %v352
    %v424 = vunpack.c.l.b16 %v353
    %v425 = vunpack.c.l.b16 %v354
    %v426 = vunpack.c.l.b16 %v355
    %v427 = vunpack.c.l.b16 %v356
    %v428 = vunpack.c.l.b16 %v357
    %v429 = vunpack.c.l.b16 %v358
    %v430 = vpack.c.b16 %v399, %v398
    %v431 = vpack.c.b16 %v401, %v400
    %v432 = vpack.c.b16 %v403, %v402
    %v433 = vpack.c.b16 %v405, %v404
    %v434 = vpack.c.b16 %v407, %v406
    %v435 = vpack.c.b16 %v409, %v408
    %v436 = vpack.c.b16 %v411, %v410
    %v437 = vpack.c.b16 %v413, %v412
    %v438 = vpack.c.b16 %v415, %v414
    %v439 = vpack.c.b16 %v417, %v416
    %v440 = vpack.c.b16 %v419, %v418
    %v441 = vpack.c.b16 %v421, %v420
    %v442 = vpack.c.b16 %v423, %v422
    %v443 = vpack.c.b16 %v425, %v424
    %v444 = vpack.c.b16 %v427, %v426
    %v445 = vpack.c.b16 %v429, %v428
    %462 = vmatprep.subr.bf16.mxu0 0
    %463 = vmatpush1.bf16.msra.mxu0 %v437
    %464 = vmatprep.subr.bf16.mxu0 0
    %465 = vmatpush1.bf16.msra.mxu0 %v436
    %466 = vmatprep.subr.bf16.mxu0 0
    %467 = vmatpush1.bf16.msra.mxu0 %v435
    %468 = vmatprep.subr.bf16.mxu0 0
    %469 = vmatpush1.bf16.msra.mxu0 %v434
    %470 = vmatprep.subr.bf16.mxu0 0
    %471 = vmatpush1.bf16.msra.mxu0 %v433
    %472 = vmatprep.subr.bf16.mxu0 0
    %473 = vmatpush1.bf16.msra.mxu0 %v432
    %474 = vmatprep.subr.bf16.mxu0 0
    %475 = vmatpush1.bf16.msra.mxu0 %v431
    %476 = vmatprep.subr.bf16.mxu0 0
    %477 = vmatpush1.bf16.msra.mxu0 %v430
    %478 = vmatprep.subr.bf16.mxu0 0
    %479 = vmatpush2.bf16.msra.mxu0 %v445
    %480 = vmatprep.subr.bf16.mxu0 0
    %481 = vmatpush2.bf16.msra.mxu0 %v444
    %482 = vmatprep.subr.bf16.mxu0 0
    %483 = vmatpush2.bf16.msra.mxu0 %v443
    %484 = vmatprep.subr.bf16.mxu0 0
    %485 = vmatpush2.bf16.msra.mxu0 %v442
    %486 = vmatprep.subr.bf16.mxu0 0
    %487 = vmatpush2.bf16.msra.mxu0 %v441
    %488 = vmatprep.subr.bf16.mxu0 0
    %489 = vmatpush2.bf16.msra.mxu0 %v440
    %490 = vmatprep.subr.bf16.mxu0 0
    %491 = vmatpush2.bf16.msra.mxu0 %v439
    %492 = vmatprep.subr.bf16.mxu0 0
    %493 = vmatpush2.bf16.msra.mxu0 %v438
    %494 = vmatprep.mubr.bf16.mxu0 %v326
    %495 = vmatmul.mubr.bf16.gmra.mxu0 %v325
    %v496 = vpop.f32.mrf.mxu0
    %v497 = vadd.f32 %v364, %v496
    %v498 = vpop.f32.mrf.mxu0
    %v499 = vpop.f32.mrf.mxu0
    %v500 = vadd.f32 %v364, %v499
    %v501 = vpop.f32.mrf.mxu0
    %502 = vdwg.mxu0
    %503 = vst [vmem:[#allocation8] sm:$0xff] %v497
    %504 = vst [vmem:[#allocation8 + $0x8] sm:$0xff] %v500
    // Predicated region
    $region34: #{tpu_custom_call.1} parent=1 // pred_check
      _
    $region35: #{tpu_custom_call.1} parent=1 // pred_check_branch
      %506 = sbr.rel (0) target = $region37
    $region36: #{tpu_custom_call.1} parent=1 // pred_region
      %s508 = ssub.s32 256, 256
      %509 = vsyncadd [#allocation4], %s508
      %s510 = sshll.u32 [#allocation8], 4
      %s511 = int_to_ptr.vmem [resolvable:$true] %s510
      %516 = dma.vmem_to_hbm [thread:$0]  %s511, 256, %s5, [#allocation4], 128, 128, 8
    $region37: #{tpu_custom_call.1} parent=1 // pred_fallthru
      _
    // Predicated region
    $region38: #{tpu_custom_call.1} parent=1 // pred_check
      _
    $region39: #{tpu_custom_call.1} parent=1 // pred_check_branch
      %518 = sbr.rel (0) target = $region41
    $region40: #{tpu_custom_call.1} parent=1 // pred_region
      %519 = dma.done [#allocation4], 256
    $region41: #{tpu_custom_call.1} parent=1 // pred_fallthru
      _
    %520 = vsyncpa [#allocation3], 1
    %521 = vsyncpa [#allocation6], 1
    %522 = vsyncpa [#allocation4], 1

</llo_original>
